<compile_context>
chip_gen: v7x
topology: tpu7x:2x2x1
jax: 0.10.0
libtpu: 0.0.40
codegen_flags: <defaults>
</compile_context>

<pallas_src>
import math
from functools import partial

import jax
import jax.numpy as jnp
from jax.experimental import pallas as pl
from jax.experimental.pallas import tpu as pltpu


def embeddings_kernel(x_ref, w_ref, r_ref, rt_ref, gb_ref, o_ref, *, inv_bk, eps, tnc):
    # --- ConvTranspose1d (L=1) == matmul on the MXU; bias dropped (cancelled by BN) ---
    xb = x_ref[...].astype(jnp.bfloat16)                     # in-kernel cast, hidden under pipeline
    y = jnp.dot(xb, w_ref[...], preferred_element_type=jnp.float32)          # (B, TNC) f32

    # --- BatchNorm1d training-mode statistics, per channel over (batch, K) ---
    # Factorized reduce/broadcast: R is the tile-local one-hot column->channel matrix.
    # Two-pass centered variance kept for numerical robustness.
    col_sum = jnp.sum(y, axis=0, keepdims=True)                               # (1, TNC)
    mean_ch = jnp.dot(col_sum, r_ref[...], preferred_element_type=jnp.float32) * inv_bk   # (1, TCH)
    mean = jnp.dot(mean_ch, rt_ref[...], preferred_element_type=jnp.float32)              # (1, TNC)
    centered = y - mean
    sq_sum = jnp.sum(centered * centered, axis=0, keepdims=True)              # (1, TNC)
    var_ch = jnp.dot(sq_sum, r_ref[...], preferred_element_type=jnp.float32) * inv_bk     # (1, TCH)
    inv_std = jax.lax.rsqrt(var_ch + eps)                                     # (1, TCH)
    inv_cols = jnp.dot(inv_std, rt_ref[...], preferred_element_type=jnp.float32)          # (1, TNC)

    # gamma/beta: resident (2, NC) slab, slice this tile's columns (TNC-aligned -> lane dense).
    off = pl.multiple_of(pl.program_id(0) * tnc, tnc)
    gb = gb_ref[:, pl.ds(off, tnc)]                                           # (2, TNC)
    scale = gb[0:1, :] * inv_cols
    o_ref[...] = (centered * scale + gb[1:2, :]).astype(o_ref.dtype)


def _round_up(x, m):
    return (x + m - 1) // m * m


def _pick_channel_tile(nc_pad, K, batch_hint, c_in, out_bytes, *, target_cols, vmem_budget):
    """Largest lane-dense, whole-channel tile that divides nc_pad, fits the VMEM budget and
    (when possible) leaves >= 2 grid steps so both v7x TensorCores get work."""
    base = K * 128 // math.gcd(K, 128)                       # lcm(K, 128)
    assert nc_pad % base == 0

    def step_bytes(tnc):
        tch = tnc // K
        return (2 * batch_hint * c_in * 4                    # x (resident, pessimistic x2)
                + 3 * c_in * tnc * 2                         # W slab buffers (bf16)
                + 2 * 2 * tnc * tch * 4                      # R + R^T (resident)
                + 2 * batch_hint * tnc * out_bytes           # output tile (double-buffered)
                + 2 * batch_hint * tnc * 4)                  # f32 intermediates (y, centered)

    cands = [m for m in range(base, nc_pad + 1, base) if nc_pad % m == 0]
    multi = [m for m in cands if m <= nc_pad // 2]           # keep >= 2 grid steps when possible
    pool = multi if multi else cands
    best = pool[0]
    for m in pool:
        if m <= target_cols and step_bytes(m) <= vmem_budget and m > best:
            best = m
    return best


def build_embeddings_params(weight, gamma, beta, *, target_tile=2048, max_batch=1024,
                            out_dtype=jnp.float32):
    """Build kernel-layout parameters ONCE (hoisted off the per-call hot path)."""
    c_in, n_col, K = weight.shape
    NC = n_col * K

    base = K * 128 // math.gcd(K, 128)                       # whole channels + 128-lane dense
    NC_pad = _round_up(NC, base)                             # pad -> unmasked lane-dense stores
    n_col_pad = NC_pad // K

    try:
        vmem_cap = int(pltpu.get_tpu_info().vmem_capacity_bytes)
    except Exception:
        vmem_cap = 64 * 1024 * 1024                          # conservative (v7x) fallback

    out_bytes = jnp.dtype(out_dtype).itemsize
    TNC = _pick_channel_tile(NC_pad, K, max_batch, c_in, out_bytes,
                             target_cols=target_tile, vmem_budget=int(0.6 * vmem_cap))
    TCH = TNC // K

    w_flat = weight.reshape(c_in, NC).astype(jnp.bfloat16)
    if NC_pad != NC:
        w_flat = jnp.pad(w_flat, ((0, 0), (0, NC_pad - NC)))

    g = gamma.astype(jnp.float32)
    b = beta.astype(jnp.float32)
    if n_col_pad != n_col:
        g = jnp.concatenate([g, jnp.ones((n_col_pad - n_col,), jnp.float32)])
        b = jnp.concatenate([b, jnp.zeros((n_col_pad - n_col,), jnp.float32)])
    gb_cols = jnp.stack([jnp.repeat(g, K), jnp.repeat(b, K)], axis=0)         # (2, NC_pad)

    ch = jnp.arange(TNC) // K                                                 # tile-local channel ids
    r = (ch[:, None] == jnp.arange(TCH)[None, :]).astype(jnp.float32)         # (TNC, TCH)
    rt = r.T                                                                  # (TCH, TNC)

    return dict(w_flat=w_flat, gb_cols=gb_cols, r=r, rt=rt,
                c_in=c_in, n_col=n_col, K=K, NC=NC, NC_pad=NC_pad,
                TNC=TNC, TCH=TCH, out_dtype=out_dtype, vmem_cap=vmem_cap)


def embeddings_forward(x, params, *, eps=1e-5):
    """x: (B, input_dim).  Returns (B, n_col, K) matching the PyTorch module forward
    (training-mode BatchNorm)."""
    B, c_in = x.shape
    assert c_in == params["c_in"]
    n_col, K = params["n_col"], params["K"]
    NC, NC_pad, TNC, TCH = params["NC"], params["NC_pad"], params["TNC"], params["TCH"]
    out_dtype = params["out_dtype"]
    n_tiles = NC_pad // TNC

    kernel = partial(embeddings_kernel, inv_bk=1.0 / float(B * K), eps=float(eps), tnc=TNC)

    # W slab is the only per-step DMA; deepen its pipeline when the grid is long enough.
    w_spec = pl.BlockSpec((c_in, TNC), lambda i: (0, i))
    if n_tiles >= 3 and hasattr(pl, "Buffered"):
        try:
            w_spec = pl.BlockSpec((c_in, TNC), lambda i: (0, i), pipeline_mode=pl.Buffered(3))
        except TypeError:
            pass                                              # older API: keep default double-buffering

    out_bytes = jnp.dtype(out_dtype).itemsize
    w_bufs = 3 if n_tiles >= 3 else 2
    step_bytes = (2 * B * c_in * 4
                  + w_bufs * c_in * TNC * 2
                  + 2 * 2 * TNC * TCH * 4
                  + 2 * 2 * NC_pad * 4
                  + 2 * B * TNC * out_bytes
                  + 2 * B * TNC * 4)
    vmem_cap = params["vmem_cap"]
    vmem_limit = int(min(vmem_cap - 8 * 1024 * 1024,          # headroom for compiler scratch
                         max(32 * 1024 * 1024, 2 * step_bytes)))
    vmem_limit = max(vmem_limit, 16 * 1024 * 1024)

    out_flat = pl.pallas_call(
        kernel,
        out_shape=jax.ShapeDtypeStruct((B, NC_pad), out_dtype),
        grid_spec=pltpu.PrefetchScalarGridSpec(
            num_scalar_prefetch=0,
            grid=(n_tiles,),
            in_specs=[
                pl.BlockSpec((B, c_in), lambda i: (0, 0)),       # x: resident, bf16 cast in-kernel
                w_spec,                                          # W channel slab (dominant DMA)
                pl.BlockSpec((TNC, TCH), lambda i: (0, 0)),      # R   (reduce), resident
                pl.BlockSpec((TCH, TNC), lambda i: (0, 0)),      # R^T (broadcast), resident
                pl.BlockSpec((2, NC_pad), lambda i: (0, 0)),     # [gamma; beta], resident
            ],
            out_specs=pl.BlockSpec((B, TNC), lambda i: (0, i)),
        ),
        compiler_params=pltpu.CompilerParams(
            dimension_semantics=("parallel",),                   # channel tiles independent -> megacore
            vmem_limit_bytes=vmem_limit,
        ),
    )(x, params["w_flat"], params["r"], params["rt"], params["gb_cols"])

    if NC_pad != NC:
        out_flat = out_flat[:, :NC]
    return out_flat.reshape(B, n_col, K)


def embeddings_ref(x, weight, bias, gamma, beta, eps=1e-5):
    """Pure-JAX f32 reference of the PyTorch forward (training-mode BatchNorm)."""
    y = jnp.einsum("bi,iok->bok", x, weight,
                   precision=jax.lax.Precision.HIGHEST) + bias[None, :, None]
    mean = jnp.mean(y, axis=(0, 2), keepdims=True)
    var = jnp.mean((y - mean) ** 2, axis=(0, 2), keepdims=True)
    return gamma[None, :, None] * (y - mean) / jnp.sqrt(var + eps) + beta[None, :, None]


def embeddings_ref_bf16(x, weight, gamma, beta, eps=1e-5):
    """Reference mirroring the kernel's bf16-input / f32-accumulate matmul (bias cancels)."""
    xb = x.astype(jnp.bfloat16).astype(jnp.float32)
    wb = weight.astype(jnp.bfloat16).astype(jnp.float32)
    y = jnp.einsum("bi,iok->bok", xb, wb, precision=jax.lax.Precision.HIGHEST)
    mean = jnp.mean(y, axis=(0, 2), keepdims=True)
    var = jnp.mean((y - mean) ** 2, axis=(0, 2), keepdims=True)
    return gamma[None, :, None] * (y - mean) * jax.lax.rsqrt(var + eps) + beta[None, :, None]


if __name__ == "__main__":
    # Small shapes consistent with the module: input_dim=4, d_model(output_dim)=32, n_col=16, batch=8.
    B, input_dim, n_col, output_dim = 8, 4, 16, 32

    key = jax.random.PRNGKey(0)
    kx, kw, kb, kg, kbt = jax.random.split(key, 5)

    x = jax.random.normal(kx, (B, input_dim), dtype=jnp.float32)
    weight = 0.1 * jax.random.normal(kw, (input_dim, n_col, output_dim), dtype=jnp.float32)
    bias = 0.1 * jax.random.normal(kb, (n_col,), dtype=jnp.float32)   # cancelled exactly by BN centering
    gamma = 1.0 + 0.1 * jax.random.normal(kg, (n_col,), dtype=jnp.float32)
    beta = 0.1 * jax.random.normal(kbt, (n_col,), dtype=jnp.float32)

    # One-time param prep.  NC=512, base=lcm(32,128)=128 -> TNC=256: a 2-step "parallel" grid
    # (exercises multi-tile stores + megacore sharding) with factorized R/R^T helpers.
    params = build_embeddings_params(weight, gamma, beta, max_batch=B)

    out = embeddings_forward(x, params)
    out = jax.block_until_ready(out)
    assert out.shape == (B, n_col, output_dim), out.shape

    # Tight check vs. a bf16-input-faithful reference (validates conv/BN/tiling/padding logic).
    ref_bf16 = embeddings_ref_bf16(x, weight, gamma, beta)
    assert jnp.allclose(out, ref_bf16, rtol=1e-3, atol=1e-3), \
        float(jnp.max(jnp.abs(out - ref_bf16)))

    # Looser check vs. the true f32 PyTorch semantics (bf16 rounding of x/W only).
    ref_f32 = embeddings_ref(x, weight, bias, gamma, beta)
    assert jnp.allclose(out, ref_f32, rtol=3e-2, atol=3e-2), \
        float(jnp.max(jnp.abs(out - ref_f32)))

    print("KERNEL_OK")
</pallas_src>

<mosaic_0001>
module attributes {stable_mosaic.version = 11 : i64} {
  func.func @embeddings_kernel(%arg0: i32, %arg1: memref<8x4xf32, #tpu.memory_space<vmem>>, %arg2: memref<4x256xbf16, #tpu.memory_space<vmem>>, %arg3: memref<256x8xf32, #tpu.memory_space<vmem>>, %arg4: memref<8x256xf32, #tpu.memory_space<vmem>>, %arg5: memref<2x512xf32, #tpu.memory_space<vmem>>, %arg6: memref<8x256xf32, #tpu.memory_space<vmem>>) attributes {dimension_semantics = [#tpu.dimension_semantics<parallel>], iteration_bounds = array<i64: 2>, scalar_prefetch = 0 : i64, scratch_operands = 0 : i64, tpu.core_type = #tpu.core_type<tc>, window_params = [{pipeline_mode = #tpu.pipeline_mode<synchronous>, transform_indices = @transform_0, window_bounds = array<i64: 8, 4>}, {transform_indices = @transform_1, window_bounds = array<i64: 4, 256>}, {pipeline_mode = #tpu.pipeline_mode<synchronous>, transform_indices = @transform_2, window_bounds = array<i64: 256, 8>}, {pipeline_mode = #tpu.pipeline_mode<synchronous>, transform_indices = @transform_3, window_bounds = array<i64: 8, 256>}, {pipeline_mode = #tpu.pipeline_mode<synchronous>, transform_indices = @transform_4, window_bounds = array<i64: 2, 512>}, {transform_indices = @transform_5, window_bounds = array<i64: 8, 256>}]} {
    %c0 = arith.constant 0 : index
    %c0_0 = arith.constant 0 : index
    %0 = vector.load %arg1[%c0, %c0_0] : memref<8x4xf32, #tpu.memory_space<vmem>>, vector<8x4xf32>
    %1 = arith.truncf %0 : vector<8x4xf32> to vector<8x4xbf16>
    %c0_1 = arith.constant 0 : index
    %c0_2 = arith.constant 0 : index
    %2 = vector.load %arg2[%c0_1, %c0_2] : memref<4x256xbf16, #tpu.memory_space<vmem>>, vector<4x256xbf16>
    %cst = arith.constant dense<0.000000e+00> : vector<8x256xf32>
    %3 = tpu.matmul %1, %2, %cst {dimension_numbers = #tpu.dot_dimension_numbers<[1], [0], [0], [1], [0, 0, 1, 1], [], []>} : vector<8x4xbf16>, vector<4x256xbf16>, vector<8x256xf32> -> vector<8x256xf32>
    %cst_3 = arith.constant dense<0.000000e+00> : vector<256xf32>
    %4 = vector.multi_reduction <add>, %3, %cst_3 [0] : vector<8x256xf32> to vector<256xf32>
    %5 = vector.shape_cast %4 : vector<256xf32> to vector<1x256xf32>
    %c0_4 = arith.constant 0 : index
    %c0_5 = arith.constant 0 : index
    %6 = vector.load %arg3[%c0_4, %c0_5] : memref<256x8xf32, #tpu.memory_space<vmem>>, vector<256x8xf32>
    %cst_6 = arith.constant dense<0.000000e+00> : vector<1x8xf32>
    %7 = tpu.matmul %5, %6, %cst_6 {dimension_numbers = #tpu.dot_dimension_numbers<[1], [0], [0], [1], [0, 0, 1, 1], [], []>} : vector<1x256xf32>, vector<256x8xf32>, vector<1x8xf32> -> vector<1x8xf32>
    %cst_7 = arith.constant 3.906250e-03 : f32
    %8 = vector.broadcast %cst_7 : f32 to vector<1x8xf32>
    %9 = arith.mulf %7, %8 : vector<1x8xf32>
    %c0_8 = arith.constant 0 : index
    %c0_9 = arith.constant 0 : index
    %10 = vector.load %arg4[%c0_8, %c0_9] : memref<8x256xf32, #tpu.memory_space<vmem>>, vector<8x256xf32>
    %cst_10 = arith.constant dense<0.000000e+00> : vector<1x256xf32>
    %11 = tpu.matmul %9, %10, %cst_10 {dimension_numbers = #tpu.dot_dimension_numbers<[1], [0], [0], [1], [0, 0, 1, 1], [], []>} : vector<1x8xf32>, vector<8x256xf32>, vector<1x256xf32> -> vector<1x256xf32>
    %12 = vector.broadcast %11 : vector<1x256xf32> to vector<8x256xf32>
    %13 = arith.subf %3, %12 : vector<8x256xf32>
    %14 = arith.mulf %13, %13 : vector<8x256xf32>
    %cst_11 = arith.constant dense<0.000000e+00> : vector<256xf32>
    %15 = vector.multi_reduction <add>, %14, %cst_11 [0] : vector<8x256xf32> to vector<256xf32>
    %16 = vector.shape_cast %15 : vector<256xf32> to vector<1x256xf32>
    %c0_12 = arith.constant 0 : index
    %c0_13 = arith.constant 0 : index
    %17 = vector.load %arg3[%c0_12, %c0_13] : memref<256x8xf32, #tpu.memory_space<vmem>>, vector<256x8xf32>
    %cst_14 = arith.constant dense<0.000000e+00> : vector<1x8xf32>
    %18 = tpu.matmul %16, %17, %cst_14 {dimension_numbers = #tpu.dot_dimension_numbers<[1], [0], [0], [1], [0, 0, 1, 1], [], []>} : vector<1x256xf32>, vector<256x8xf32>, vector<1x8xf32> -> vector<1x8xf32>
    %cst_15 = arith.constant 3.906250e-03 : f32
    %19 = vector.broadcast %cst_15 : f32 to vector<1x8xf32>
    %20 = arith.mulf %18, %19 : vector<1x8xf32>
    %cst_16 = arith.constant 9.99999974E-6 : f32
    %21 = vector.broadcast %cst_16 : f32 to vector<1x8xf32>
    %22 = arith.addf %20, %21 : vector<1x8xf32>
    %23 = math.rsqrt %22 : vector<1x8xf32>
    %c0_17 = arith.constant 0 : index
    %c0_18 = arith.constant 0 : index
    %24 = vector.load %arg4[%c0_17, %c0_18] : memref<8x256xf32, #tpu.memory_space<vmem>>, vector<8x256xf32>
    %cst_19 = arith.constant dense<0.000000e+00> : vector<1x256xf32>
    %25 = tpu.matmul %23, %24, %cst_19 {dimension_numbers = #tpu.dot_dimension_numbers<[1], [0], [0], [1], [0, 0, 1, 1], [], []>} : vector<1x8xf32>, vector<8x256xf32>, vector<1x256xf32> -> vector<1x256xf32>
    %c256_i32 = arith.constant 256 : i32
    %26 = arith.muli %arg0, %c256_i32 : i32
    %27 = tpu.assume_multiple %26, 256 : i32
    %c0_20 = arith.constant 0 : index
    %28 = arith.index_cast %27 : i32 to index
    %29 = vector.load %arg5[%c0_20, %28] : memref<2x512xf32, #tpu.memory_space<vmem>>, vector<2x256xf32>
    %30 = vector.extract_strided_slice %29 {offsets = [0, 0], sizes = [1, 256], strides = [1, 1]} : vector<2x256xf32> to vector<1x256xf32>
    %31 = arith.mulf %30, %25 : vector<1x256xf32>
    %32 = vector.broadcast %31 : vector<1x256xf32> to vector<8x256xf32>
    %33 = arith.mulf %13, %32 : vector<8x256xf32>
    %34 = vector.extract_strided_slice %29 {offsets = [1, 0], sizes = [1, 256], strides = [1, 1]} : vector<2x256xf32> to vector<1x256xf32>
    %35 = vector.broadcast %34 : vector<1x256xf32> to vector<8x256xf32>
    %36 = arith.addf %33, %35 : vector<8x256xf32>
    %c0_21 = arith.constant 0 : index
    %c0_22 = arith.constant 0 : index
    %37 = vector.load %arg6[%c0_21, %c0_22] : memref<8x256xf32, #tpu.memory_space<vmem>>, vector<8x256xf32>
    tpu.vector_store %arg6[%c0_21, %c0_22], %36 {strides = array<i32>} : memref<8x256xf32, #tpu.memory_space<vmem>>, vector<8x256xf32>,
    return
  }
  func.func @transform_0(%arg0: i32) -> (i32, i32) {
    %c0_i32 = arith.constant 0 : i32
    %c0_i32_0 = arith.constant 0 : i32
    %c0_i32_1 = arith.constant 0 : i32
    return %c0_i32, %c0_i32_0 : i32, i32
  }
  func.func @transform_1(%arg0: i32) -> (i32, i32) {
    %c0_i32 = arith.constant 0 : i32
    %c0_i32_0 = arith.constant 0 : i32
    return %c0_i32, %arg0 : i32, i32
  }
  func.func @transform_2(%arg0: i32) -> (i32, i32) {
    %c0_i32 = arith.constant 0 : i32
    %c0_i32_0 = arith.constant 0 : i32
    %c0_i32_1 = arith.constant 0 : i32
    return %c0_i32, %c0_i32_0 : i32, i32
  }
  func.func @transform_3(%arg0: i32) -> (i32, i32) {
    %c0_i32 = arith.constant 0 : i32
    %c0_i32_0 = arith.constant 0 : i32
    %c0_i32_1 = arith.constant 0 : i32
    return %c0_i32, %c0_i32_0 : i32, i32
  }
  func.func @transform_4(%arg0: i32) -> (i32, i32) {
    %c0_i32 = arith.constant 0 : i32
    %c0_i32_0 = arith.constant 0 : i32
    %c0_i32_1 = arith.constant 0 : i32
    return %c0_i32, %c0_i32_0 : i32, i32
  }
  func.func @transform_5(%arg0: i32) -> (i32, i32) {
    %c0_i32 = arith.constant 0 : i32
    %c0_i32_0 = arith.constant 0 : i32
    return %c0_i32, %arg0 : i32, i32
  }
}

</mosaic_0001>

<llo_original>
// kernel: tpu_custom_call.1
$region0: #{tpu_custom_call.1}
  #allocation0 [shape = 'u32[]', space=smem, size = 0x4, offset = 0x4, fixed_abs, tag = 'smem constant byte address 0x4 - core index']
  #allocation1 [shape = 'u32[144,128]{1,0:T(1,128)}', space=vmem, size = 0x12000, scoped, tag = 'internal scratch']
  %s0 = inlined_call_operand.vmem [shape: f32[8,4], index: 0, kind: input, shape index: {}]
  %s1 = inlined_call_operand.vmem [shape: bf16[4,512], index: 1, kind: input, shape index: {}]
  %s2 = inlined_call_operand.vmem [shape: f32[256,8], index: 2, kind: input, shape index: {}]
  %s3 = inlined_call_operand.vmem [shape: f32[8,256], index: 3, kind: input, shape index: {}]
  %s4 = inlined_call_operand.vmem [shape: f32[2,512], index: 4, kind: input, shape index: {}]
  %s5 = inlined_call_operand.hbm [shape: f32[8,512], index: 5, kind: output, shape index: {}]
  %s6 = sld [smem:[#allocation0]]
  $region53: #{tpu_custom_call.1} parent=0
    _
  %s8 = ssub.s32 1, %s6
  %s9 = scalar_select 0, %s8, %s6
  $region1: #{tpu_custom_call.1} parent=0
    #allocation2 [shape = 'u8[16384]{0}', space=vmem, size = 0x4000, scoped, tag = 'output window, operand 0']
    #allocation3 [shape = 's32[2]{0}', space=sflag, size = 0x8, scoped, tag = 'scoped memory for tpu_custom_call.1']
    %10 = vsyncpa [#allocation3], 0
    %s11 = scalar_lea.sflag [#allocation3], 1
    %12 = vsyncpa %s11, 0
    loop: start=0, step=1, limit=4
    $region2: #{tpu_custom_call.1} parent=1 // loop_pre_header
      _
    $region3: #{tpu_custom_call.1} parent=1 // loop_header
      %s14 = sphi 0, %s18
      %p15 = scmp.ge.s32.totalorder %s14, 4
      %s22 = sphi 0, %s22
      %s24 = sphi 0, %s22
      %s25 = sphi 0, %s24
      %s39 = sphi 0, %s25
      %s45 = sphi 0, %s47
      %s48 = sphi 0, %s45
      %s49 = sphi 0, %s48
      %s65 = sphi 0, %s49
      %s69 = sphi 0, %s69
      %s71 = sphi 0, %s69
      %s72 = sphi 0, %s71
      %s86 = sphi 0, %s72
      %s90 = sphi 0, %s90
      %s92 = sphi 0, %s90
      %s93 = sphi 0, %s92
      %s107 = sphi 0, %s93
      %s111 = sphi 0, %s111
      %s113 = sphi 0, %s111
      %s114 = sphi 0, %s113
      %s128 = sphi 0, %s114
      %s134 = sphi 0, %s136
      %s137 = sphi 0, %s134
      %s138 = sphi 0, %s137
      %s154 = sphi 0, %s138
    $region4: #{tpu_custom_call.1} parent=1 // loop_header_branch
      %17 = sbr.rel (%p15) target = $region8
    $region5: #{tpu_custom_call.1} parent=1 // loop_body
      %s19 = ssub.s32 %s14, 1
      %s20 = ssub.s32 %s14, 2
      %s21 = sadd.s32 %s14, 1
      %s23 = sadd.s32 %s22, 1
      %p26 = scmp.eq.s32.totalorder %s14, 1
      %p27 = scmp.ne.s32.totalorder %s22, %s24
      %p28 = scmp.eq.s32.totalorder %s14, 0
      %p29 = por %p27, %p28
      %p30 = scmp.ne.s32.totalorder %s22, %s24
      %p31 = scmp.eq.s32.totalorder %s19, 1
      %p32 = por %p30, %p31
      %p33 = scmp.ne.s32.totalorder %s24, %s25
      %p34 = scmp.eq.s32.totalorder %s19, 0
      %p35 = por %p33, %p34
      %p36 = scmp.ne.s32.totalorder %s24, %s25
      %p37 = scmp.eq.s32.totalorder %s20, 1
      %p38 = por %p36, %p37
      %p40 = scmp.ne.s32.totalorder %s25, %s39
      %p41 = scmp.eq.s32.totalorder %s20, 0
      %p42 = por %p40, %p41
      %s43 = ssub.s32 %s14, %s21
      %p44 = scmp.eq.s32.totalorder %s43, 0
      %s46 = sadd.s32 %s45, 1
      %s47 = scalar_select %p44, %s45, %s46
      %p50 = pneg %p44
      %p51 = scmp.eq.s32.totalorder %s14, 1
      %p52 = por %p50, %p51
      %p53 = scmp.ne.s32.totalorder %s45, %s48
      %p54 = scmp.eq.s32.totalorder %s14, 0
      %p55 = por %p53, %p54
      %p56 = scmp.ne.s32.totalorder %s45, %s48
      %p57 = scmp.eq.s32.totalorder %s19, 1
      %p58 = por %p56, %p57
      %p59 = scmp.ne.s32.totalorder %s48, %s49
      %p60 = scmp.eq.s32.totalorder %s19, 0
      %p61 = por %p59, %p60
      %p62 = scmp.ne.s32.totalorder %s48, %s49
      %p63 = scmp.eq.s32.totalorder %s20, 1
      %p64 = por %p62, %p63
      %p66 = scmp.ne.s32.totalorder %s49, %s65
      %p67 = scmp.eq.s32.totalorder %s20, 0
      %p68 = por %p66, %p67
      %s70 = sadd.s32 %s69, 1
      %p73 = scmp.eq.s32.totalorder %s14, 1
      %p74 = scmp.ne.s32.totalorder %s69, %s71
      %p75 = scmp.eq.s32.totalorder %s14, 0
      %p76 = por %p74, %p75
      %p77 = scmp.ne.s32.totalorder %s69, %s71
      %p78 = scmp.eq.s32.totalorder %s19, 1
      %p79 = por %p77, %p78
      %p80 = scmp.ne.s32.totalorder %s71, %s72
      %p81 = scmp.eq.s32.totalorder %s19, 0
      %p82 = por %p80, %p81
      %p83 = scmp.ne.s32.totalorder %s71, %s72
      %p84 = scmp.eq.s32.totalorder %s20, 1
      %p85 = por %p83, %p84
      %p87 = scmp.ne.s32.totalorder %s72, %s86
      %p88 = scmp.eq.s32.totalorder %s20, 0
      %p89 = por %p87, %p88
      %s91 = sadd.s32 %s90, 1
      %p94 = scmp.eq.s32.totalorder %s14, 1
      %p95 = scmp.ne.s32.totalorder %s90, %s92
      %p96 = scmp.eq.s32.totalorder %s14, 0
      %p97 = por %p95, %p96
      %p98 = scmp.ne.s32.totalorder %s90, %s92
      %p99 = scmp.eq.s32.totalorder %s19, 1
      %p100 = por %p98, %p99
      %p101 = scmp.ne.s32.totalorder %s92, %s93
      %p102 = scmp.eq.s32.totalorder %s19, 0
      %p103 = por %p101, %p102
      %p104 = scmp.ne.s32.totalorder %s92, %s93
      %p105 = scmp.eq.s32.totalorder %s20, 1
      %p106 = por %p104, %p105
      %p108 = scmp.ne.s32.totalorder %s93, %s107
      %p109 = scmp.eq.s32.totalorder %s20, 0
      %p110 = por %p108, %p109
      %s112 = sadd.s32 %s111, 1
      %p115 = scmp.eq.s32.totalorder %s14, 1
      %p116 = scmp.ne.s32.totalorder %s111, %s113
      %p117 = scmp.eq.s32.totalorder %s14, 0
      %p118 = por %p116, %p117
      %p119 = scmp.ne.s32.totalorder %s111, %s113
      %p120 = scmp.eq.s32.totalorder %s19, 1
      %p121 = por %p119, %p120
      %p122 = scmp.ne.s32.totalorder %s113, %s114
      %p123 = scmp.eq.s32.totalorder %s19, 0
      %p124 = por %p122, %p123
      %p125 = scmp.ne.s32.totalorder %s113, %s114
      %p126 = scmp.eq.s32.totalorder %s20, 1
      %p127 = por %p125, %p126
      %p129 = scmp.ne.s32.totalorder %s114, %s128
      %p130 = scmp.eq.s32.totalorder %s20, 0
      %p131 = por %p129, %p130
      %s132 = ssub.s32 %s14, %s21
      %p133 = scmp.eq.s32.totalorder %s132, 0
      %s135 = sadd.s32 %s134, 1
      %s136 = scalar_select %p133, %s134, %s135
      %p139 = pneg %p133
      %p140 = scmp.eq.s32.totalorder %s14, 1
      %p141 = por %p139, %p140
      %p142 = scmp.ne.s32.totalorder %s134, %s137
      %p143 = scmp.eq.s32.totalorder %s14, 0
      %p144 = por %p142, %p143
      %p145 = scmp.ne.s32.totalorder %s134, %s137
      %p146 = scmp.eq.s32.totalorder %s19, 1
      %p147 = por %p145, %p146
      %p148 = scmp.ne.s32.totalorder %s137, %s138
      %p149 = scmp.eq.s32.totalorder %s19, 0
      %p150 = por %p148, %p149
      %p151 = scmp.ne.s32.totalorder %s137, %s138
      %p152 = scmp.eq.s32.totalorder %s20, 1
      %p153 = por %p151, %p152
      %p155 = scmp.ne.s32.totalorder %s138, %s154
      %p156 = scmp.eq.s32.totalorder %s20, 0
      %p157 = por %p155, %p156
      %p158 = scmp.le.s32.totalorder 1, %s14
      %p159 = scmp.lt.s32.totalorder %s14, 3
      %p160 = pnand %p158, %p159
      %p161 = pneg %p160
      // Predicated region
      $region9: #{tpu_custom_call.1} parent=5 // pred_check
        _
      $region10: #{tpu_custom_call.1} parent=5 // pred_check_branch
        %163 = sbr.rel (%p160) target = $region12
      $region11: #{tpu_custom_call.1} parent=5 // pred_region
        %s164 = ssub.s32 %s14, 1
        // Predicated region
        $region13: #{tpu_custom_call.1} parent=11 // pred_check
          %p165 = pneg %p35
        $region14: #{tpu_custom_call.1} parent=11 // pred_check_branch
          %167 = sbr.rel (%p165) target = $region16
        $region15: #{tpu_custom_call.1} parent=11 // pred_region
          _
        $region16: #{tpu_custom_call.1} parent=11 // pred_fallthru
          _
        // Predicated region
        $region17: #{tpu_custom_call.1} parent=11 // pred_check
          %p168 = pneg %p82
        $region18: #{tpu_custom_call.1} parent=11 // pred_check_branch
          %170 = sbr.rel (%p168) target = $region20
        $region19: #{tpu_custom_call.1} parent=11 // pred_region
          _
        $region20: #{tpu_custom_call.1} parent=11 // pred_fallthru
          _
        // Predicated region
        $region21: #{tpu_custom_call.1} parent=11 // pred_check
          %p171 = pneg %p103
        $region22: #{tpu_custom_call.1} parent=11 // pred_check_branch
          %173 = sbr.rel (%p171) target = $region24
        $region23: #{tpu_custom_call.1} parent=11 // pred_region
          _
        $region24: #{tpu_custom_call.1} parent=11 // pred_fallthru
          _
        // Predicated region
        $region25: #{tpu_custom_call.1} parent=11 // pred_check
          %p174 = pneg %p124
        $region26: #{tpu_custom_call.1} parent=11 // pred_check_branch
          %176 = sbr.rel (%p174) target = $region28
        $region27: #{tpu_custom_call.1} parent=11 // pred_region
          _
        $region28: #{tpu_custom_call.1} parent=11 // pred_fallthru
          _
      $region12: #{tpu_custom_call.1} parent=5 // pred_fallthru
        _
      %p177 = scmp.lt.s32.totalorder %s14, 2
      // Predicated region
      $region29: #{tpu_custom_call.1} parent=5 // pred_check
        %p178 = pneg %p177
      $region30: #{tpu_custom_call.1} parent=5 // pred_check_branch
        %180 = sbr.rel (%p178) target = $region32
      $region31: #{tpu_custom_call.1} parent=5 // pred_region
        // Predicated region
        $region33: #{tpu_custom_call.1} parent=31 // pred_check
          %p181 = pneg %p55
        $region34: #{tpu_custom_call.1} parent=31 // pred_check_branch
          %183 = sbr.rel (%p181) target = $region36
        $region35: #{tpu_custom_call.1} parent=31 // pred_region
          %s184 = smul.u32 2, %s14
          %p185 = scmp.lt.s32.totalorder %s184, 3
          %s186 = scalar_select %p185, %s184, 3
          %s187 = smul.addr %s186, 2
          %s188 = scalar_lea.vmem %s1, %s187
          %s189 = smul.u32 2, %s14
        $region36: #{tpu_custom_call.1} parent=31 // pred_fallthru
          _
      $region32: #{tpu_custom_call.1} parent=5 // pred_fallthru
        _
      %p190 = scmp.le.s32.totalorder 1, %s14
      %p191 = scmp.lt.s32.totalorder %s14, 3
      %p192 = pnand %p190, %p191
      %p193 = pneg %p192
      // Predicated region
      $region37: #{tpu_custom_call.1} parent=5 // pred_check
        _
      $region38: #{tpu_custom_call.1} parent=5 // pred_check_branch
        %195 = sbr.rel (%p192) target = $region40
      $region39: #{tpu_custom_call.1} parent=5 // pred_region
        %s196 = ssub.s32 %s14, 1
        %p197 = pneg %p35
        %p198 = pneg %p32
        %s199 = smul.u32 2, %s19
        %p200 = scmp.lt.s32.totalorder %s199, 3
        %s201 = scalar_select %p200, %s199, 3
        %s202 = smul.addr %s201, 2
        %s203 = scalar_lea.vmem %s1, %s202
        %p204 = pneg %p61
        %p205 = pneg %p58
        %p206 = pneg %p82
        %p207 = pneg %p79
        %p208 = pneg %p103
        %p209 = pneg %p100
        %p210 = pneg %p124
        %p211 = pneg %p121
        %p212 = pneg %p150
        %p213 = pneg %p147
        %s214 = sand.u32 %s137, 1
        %s215 = scalar_lea.sflag [#allocation3], %s214
        %s216 = sand.u32 %s137, 1
        %s217 = smul.addr %s216, 16
        %s218 = scalar_lea.vmem [#allocation2], %s217
        %s219 = smul.u32 2, %s19
        %p220 = scmp.lt.s32.totalorder %s219, 3
        %s221 = scalar_select %p220, %s219, 3
        %s222 = smul.addr %s221, 2
        %s223 = scalar_lea.vmem %s1, %s222
        %s224 = smul.u32 2, %s19
        %s225 = smul.u32 2, %s19
        %v227 = vld [vmem:[%s0] sm:$0xff]
        %v228 = vpack.c.bf16 %v227, %v227
        %v229 = vld [vmem:[%s223] sm:$0xf]
        %v232 = vunpack.c.l.s4 1983009808
        %v233 = vunpack.c.0.s8 %v232
        %v234 = vlaneseq
        %v235 = vshrl.u32 %v234, 7
        %v236 = vsub.s32 %v233, %v235
        %v237 = vrot.slane %v229, %v236
        %v238 = vcombine.high %v237, %v237
        %vm239 = vcmask 31744
        %v241 = vsel %vm239, %v228, 0
        %vm243 = vcmask 1041408
        %v245 = vsel %vm243, %v237, 0
        %v248 = vsel %vm243, %v238, 0
        %250 = vmatprep.subr.bf16.mxu0 %v248
        %251 = vmatpush1.bf16.msra.mxu0 %v245
        %252 = vmatprep.subr.bf16.mxu0 0
        %253 = vmatpush1.bf16.msra.mxu0 0
        %254 = vmatprep.subr.bf16.mxu0 0
        %255 = vmatpush1.bf16.msra.mxu0 0
        %256 = vmatprep.subr.bf16.mxu0 0
        %257 = vmatpush1.bf16.msra.mxu0 0
        %258 = vmatprep.subr.bf16.mxu0 0
        %259 = vmatpush1.bf16.msra.mxu0 0
        %260 = vmatprep.subr.bf16.mxu0 0
        %261 = vmatpush1.bf16.msra.mxu0 0
        %262 = vmatprep.subr.bf16.mxu0 0
        %263 = vmatpush1.bf16.msra.mxu0 0
        %264 = vmatprep.subr.bf16.mxu0 0
        %265 = vmatpush1.bf16.msra.mxu0 0
        %266 = vmatprep.subr.bf16.mxu0 0
        %267 = vmatpush1.bf16.msra.mxu0 0
        %268 = vmatprep.subr.bf16.mxu0 0
        %269 = vmatpush1.bf16.msra.mxu0 0
        %270 = vmatprep.subr.bf16.mxu0 0
        %271 = vmatpush1.bf16.msra.mxu0 0
        %272 = vmatprep.subr.bf16.mxu0 0
        %273 = vmatpush1.bf16.msra.mxu0 0
        %274 = vmatprep.subr.bf16.mxu0 0
        %275 = vmatpush1.bf16.msra.mxu0 0
        %276 = vmatprep.subr.bf16.mxu0 0
        %277 = vmatpush1.bf16.msra.mxu0 0
        %278 = vmatprep.subr.bf16.mxu0 0
        %279 = vmatpush1.bf16.msra.mxu0 0
        %280 = vmatprep.subr.bf16.mxu0 0
        %281 = vmatpush1.bf16.msra.mxu0 0
        %282 = vmatprep.mubr.bf16.mxu0 0
        %283 = vmatmul.mubr.bf16.gmra.mrb[0].mxu0 %v241
        %v284 = vpop.f32.mrb[0].mxu0
        %v285 = vadd.f32 0.0, %v284
        %v286 = vpop.f32.mrb[0].mxu0
        %v287 = vadd.f32 0.0, %v286
        %v288 = vpop.f32.mrb[0].mxu0
        %v289 = vpop.f32.mrb[0].mxu0
        %290 = vdwg.mxu0
        %v291 = vrot.slane %v285, 4
        %v292 = vadd.f32 %v285, %v291
        %v293 = vrot.slane %v292, 2
        %v294 = vadd.f32 %v292, %v293
        %v295 = vrot.slane %v294, 1
        %v296 = vadd.f32 %v294, %v295
        %v297 = vrot.slane %v287, 4
        %v298 = vadd.f32 %v287, %v297
        %v299 = vrot.slane %v298, 2
        %v300 = vadd.f32 %v298, %v299
        %v301 = vrot.slane %v300, 1
        %v302 = vadd.f32 %v300, %v301
        %v303 = vld [vmem:[%s2] sm:$0xff]
        %v304 = vld [vmem:[%s2 + $0x8] sm:$0xff]
        %v305 = vld [vmem:[%s2 + $0x10] sm:$0xff]
        %v306 = vld [vmem:[%s2 + $0x18] sm:$0xff]
        %v307 = vld [vmem:[%s2 + $0x20] sm:$0xff]
        %v308 = vld [vmem:[%s2 + $0x28] sm:$0xff]
        %v309 = vld [vmem:[%s2 + $0x30] sm:$0xff]
        %v310 = vld [vmem:[%s2 + $0x38] sm:$0xff]
        %v311 = vld [vmem:[%s2 + $0x40] sm:$0xff]
        %v312 = vld [vmem:[%s2 + $0x48] sm:$0xff]
        %v313 = vld [vmem:[%s2 + $0x50] sm:$0xff]
        %v314 = vld [vmem:[%s2 + $0x58] sm:$0xff]
        %v315 = vld [vmem:[%s2 + $0x60] sm:$0xff]
        %v316 = vld [vmem:[%s2 + $0x68] sm:$0xff]
        %v317 = vld [vmem:[%s2 + $0x70] sm:$0xff]
        %v318 = vld [vmem:[%s2 + $0x78] sm:$0xff]
        %v319 = vld [vmem:[%s2 + $0x80] sm:$0xff]
        %v320 = vld [vmem:[%s2 + $0x88] sm:$0xff]
        %v321 = vld [vmem:[%s2 + $0x90] sm:$0xff]
        %v322 = vld [vmem:[%s2 + $0x98] sm:$0xff]
        %v323 = vld [vmem:[%s2 + $0xa0] sm:$0xff]
        %v324 = vld [vmem:[%s2 + $0xa8] sm:$0xff]
        %v325 = vld [vmem:[%s2 + $0xb0] sm:$0xff]
        %v326 = vld [vmem:[%s2 + $0xb8] sm:$0xff]
        %v327 = vld [vmem:[%s2 + $0xc0] sm:$0xff]
        %v328 = vld [vmem:[%s2 + $0xc8] sm:$0xff]
        %v329 = vld [vmem:[%s2 + $0xd0] sm:$0xff]
        %v330 = vld [vmem:[%s2 + $0xd8] sm:$0xff]
        %v331 = vld [vmem:[%s2 + $0xe0] sm:$0xff]
        %v332 = vld [vmem:[%s2 + $0xe8] sm:$0xff]
        %v333 = vld [vmem:[%s2 + $0xf0] sm:$0xff]
        %v334 = vld [vmem:[%s2 + $0xf8] sm:$0xff]
        %335 = vmatprep.subr.mxu0 0.0
        %336 = vmatpush1.msra.mxu0 %v303
        %337 = vmatprep.subr.mxu0 0.0
        %338 = vmatpush1.msra.mxu0 %v304
        %339 = vmatprep.subr.mxu0 0.0
        %340 = vmatpush1.msra.mxu0 %v305
        %341 = vmatprep.subr.mxu0 0.0
        %342 = vmatpush1.msra.mxu0 %v306
        %343 = vmatprep.subr.mxu0 0.0
        %344 = vmatpush1.msra.mxu0 %v307
        %345 = vmatprep.subr.mxu0 0.0
        %346 = vmatpush1.msra.mxu0 %v308
        %347 = vmatprep.subr.mxu0 0.0
        %348 = vmatpush1.msra.mxu0 %v309
        %349 = vmatprep.subr.mxu0 0.0
        %350 = vmatpush1.msra.mxu0 %v310
        %351 = vmatprep.subr.mxu0 0.0
        %352 = vmatpush1.msra.mxu0 %v311
        %353 = vmatprep.subr.mxu0 0.0
        %354 = vmatpush1.msra.mxu0 %v312
        %355 = vmatprep.subr.mxu0 0.0
        %356 = vmatpush1.msra.mxu0 %v313
        %357 = vmatprep.subr.mxu0 0.0
        %358 = vmatpush1.msra.mxu0 %v314
        %359 = vmatprep.subr.mxu0 0.0
        %360 = vmatpush1.msra.mxu0 %v315
        %361 = vmatprep.subr.mxu0 0.0
        %362 = vmatpush1.msra.mxu0 %v316
        %363 = vmatprep.subr.mxu0 0.0
        %364 = vmatpush1.msra.mxu0 %v317
        %365 = vmatprep.subr.mxu0 0.0
        %366 = vmatpush1.msra.mxu0 %v318
        %367 = vmatprep.subr.mxu0 0.0
        %368 = vmatpush1.msra.mxu0 %v319
        %369 = vmatprep.subr.mxu0 0.0
        %370 = vmatpush1.msra.mxu0 %v320
        %371 = vmatprep.subr.mxu0 0.0
        %372 = vmatpush1.msra.mxu0 %v321
        %373 = vmatprep.subr.mxu0 0.0
        %374 = vmatpush1.msra.mxu0 %v322
        %375 = vmatprep.subr.mxu0 0.0
        %376 = vmatpush1.msra.mxu0 %v323
        %377 = vmatprep.subr.mxu0 0.0
        %378 = vmatpush1.msra.mxu0 %v324
        %379 = vmatprep.subr.mxu0 0.0
        %380 = vmatpush1.msra.mxu0 %v325
        %381 = vmatprep.subr.mxu0 0.0
        %382 = vmatpush1.msra.mxu0 %v326
        %383 = vmatprep.subr.mxu0 0.0
        %384 = vmatpush1.msra.mxu0 %v327
        %385 = vmatprep.subr.mxu0 0.0
        %386 = vmatpush1.msra.mxu0 %v328
        %387 = vmatprep.subr.mxu0 0.0
        %388 = vmatpush1.msra.mxu0 %v329
        %389 = vmatprep.subr.mxu0 0.0
        %390 = vmatpush1.msra.mxu0 %v330
        %391 = vmatprep.subr.mxu0 0.0
        %392 = vmatpush1.msra.mxu0 %v331
        %393 = vmatprep.subr.mxu0 0.0
        %394 = vmatpush1.msra.mxu0 %v332
        %395 = vmatprep.subr.mxu0 0.0
        %396 = vmatpush1.msra.mxu0 %v333
        %397 = vmatprep.subr.mxu0 0.0
        %398 = vmatpush1.msra.mxu0 %v334
        %399 = vmatprep.mubr.f32.mxu0 %v302
        %400 = vmatmul.mubr.f32.gmra.mrb[0].mxu0 %v296
        %v401 = vpop.f32.mrb[0].mxu0
        %v402 = vadd.f32 0.0, %v401
        %v403 = vpop.f32.mrb[0].mxu0
        %404 = vdwg.mxu0
        %v405 = vmul.f32 %v402, 0.00390625
        %v406 = vld [vmem:[%s3] sm:$0xff]
        %v407 = vld [vmem:[%s3 + $0x8] sm:$0xff]
        %vm408 = vcmask 64512
        %v410 = vsel %vm408, %v405, 0
        %412 = vmatprep.subr.mxu0 %v407
        %413 = vmatpush1.msra.mxu0 %v406
        %414 = vmatprep.subr.mxu0 0.0
        %415 = vmatpush1.msra.mxu0 0.0
        %416 = vmatprep.subr.mxu0 0.0
        %417 = vmatpush1.msra.mxu0 0.0
        %418 = vmatprep.subr.mxu0 0.0
        %419 = vmatpush1.msra.mxu0 0.0
        %420 = vmatprep.subr.mxu0 0.0
        %421 = vmatpush1.msra.mxu0 0.0
        %422 = vmatprep.subr.mxu0 0.0
        %423 = vmatpush1.msra.mxu0 0.0
        %424 = vmatprep.subr.mxu0 0.0
        %425 = vmatpush1.msra.mxu0 0.0
        %426 = vmatprep.subr.mxu0 0.0
        %427 = vmatpush1.msra.mxu0 0.0
        %428 = vmatprep.subr.mxu0 0.0
        %429 = vmatpush1.msra.mxu0 0.0
        %430 = vmatprep.subr.mxu0 0.0
        %431 = vmatpush1.msra.mxu0 0.0
        %432 = vmatprep.subr.mxu0 0.0
        %433 = vmatpush1.msra.mxu0 0.0
        %434 = vmatprep.subr.mxu0 0.0
        %435 = vmatpush1.msra.mxu0 0.0
        %436 = vmatprep.subr.mxu0 0.0
        %437 = vmatpush1.msra.mxu0 0.0
        %438 = vmatprep.subr.mxu0 0.0
        %439 = vmatpush1.msra.mxu0 0.0
        %440 = vmatprep.subr.mxu0 0.0
        %441 = vmatpush1.msra.mxu0 0.0
        %442 = vmatprep.subr.mxu0 0.0
        %443 = vmatpush1.msra.mxu0 0.0
        %444 = vmatprep.subr.mxu0 0.0
        %445 = vmatpush1.msra.mxu0 0.0
        %446 = vmatprep.subr.mxu0 0.0
        %447 = vmatpush1.msra.mxu0 0.0
        %448 = vmatprep.subr.mxu0 0.0
        %449 = vmatpush1.msra.mxu0 0.0
        %450 = vmatprep.subr.mxu0 0.0
        %451 = vmatpush1.msra.mxu0 0.0
        %452 = vmatprep.subr.mxu0 0.0
        %453 = vmatpush1.msra.mxu0 0.0
        %454 = vmatprep.subr.mxu0 0.0
        %455 = vmatpush1.msra.mxu0 0.0
        %456 = vmatprep.subr.mxu0 0.0
        %457 = vmatpush1.msra.mxu0 0.0
        %458 = vmatprep.subr.mxu0 0.0
        %459 = vmatpush1.msra.mxu0 0.0
        %460 = vmatprep.subr.mxu0 0.0
        %461 = vmatpush1.msra.mxu0 0.0
        %462 = vmatprep.subr.mxu0 0.0
        %463 = vmatpush1.msra.mxu0 0.0
        %464 = vmatprep.subr.mxu0 0.0
        %465 = vmatpush1.msra.mxu0 0.0
        %466 = vmatprep.subr.mxu0 0.0
        %467 = vmatpush1.msra.mxu0 0.0
        %468 = vmatprep.subr.mxu0 0.0
        %469 = vmatpush1.msra.mxu0 0.0
        %470 = vmatprep.subr.mxu0 0.0
        %471 = vmatpush1.msra.mxu0 0.0
        %472 = vmatprep.subr.mxu0 0.0
        %473 = vmatpush1.msra.mxu0 0.0
        %474 = vmatprep.subr.mxu0 0.0
        %475 = vmatpush1.msra.mxu0 0.0
        %476 = vmatprep.mubr.f32.mxu0 0.0
        %477 = vmatmul.mubr.f32.gmra.mrb[0].mxu0 %v410
        %v478 = vpop.f32.mrb[0].mxu0
        %v479 = vadd.f32 0.0, %v478
        %v480 = vpop.f32.mrb[0].mxu0
        %v481 = vadd.f32 0.0, %v480
        %482 = vdwg.mxu0
        %v483 = vlaneseq
        %v484 = vshrl.u32 %v483, 7
        %v485 = vsub.s32 0, %v484
        %v486 = vrot.slane %v479, %v485
        %v487 = vlaneseq
        %v488 = vshrl.u32 %v487, 7
        %v489 = vsub.s32 0, %v488
        %v490 = vrot.slane %v481, %v489
        %v491 = vsub.f32 %v285, %v486
        %v492 = vsub.f32 %v287, %v490
        %v493 = vmul.f32 %v491, %v491
        %v494 = vmul.f32 %v492, %v492
        %v495 = vrot.slane %v493, 4
        %v496 = vadd.f32 %v493, %v495
        %v497 = vrot.slane %v496, 2
        %v498 = vadd.f32 %v496, %v497
        %v499 = vrot.slane %v498, 1
        %v500 = vadd.f32 %v498, %v499
        %v501 = vrot.slane %v494, 4
        %v502 = vadd.f32 %v494, %v501
        %v503 = vrot.slane %v502, 2
        %v504 = vadd.f32 %v502, %v503
        %v505 = vrot.slane %v504, 1
        %v506 = vadd.f32 %v504, %v505
        %507 = vmatprep.subr.mxu0 0.0
        %508 = vmatpush1.msra.mxu0 %v303
        %509 = vmatprep.subr.mxu0 0.0
        %510 = vmatpush1.msra.mxu0 %v304
        %511 = vmatprep.subr.mxu0 0.0
        %512 = vmatpush1.msra.mxu0 %v305
        %513 = vmatprep.subr.mxu0 0.0
        %514 = vmatpush1.msra.mxu0 %v306
        %515 = vmatprep.subr.mxu0 0.0
        %516 = vmatpush1.msra.mxu0 %v307
        %517 = vmatprep.subr.mxu0 0.0
        %518 = vmatpush1.msra.mxu0 %v308
        %519 = vmatprep.subr.mxu0 0.0
        %520 = vmatpush1.msra.mxu0 %v309
        %521 = vmatprep.subr.mxu0 0.0
        %522 = vmatpush1.msra.mxu0 %v310
        %523 = vmatprep.subr.mxu0 0.0
        %524 = vmatpush1.msra.mxu0 %v311
        %525 = vmatprep.subr.mxu0 0.0
        %526 = vmatpush1.msra.mxu0 %v312
        %527 = vmatprep.subr.mxu0 0.0
        %528 = vmatpush1.msra.mxu0 %v313
        %529 = vmatprep.subr.mxu0 0.0
        %530 = vmatpush1.msra.mxu0 %v314
        %531 = vmatprep.subr.mxu0 0.0
        %532 = vmatpush1.msra.mxu0 %v315
        %533 = vmatprep.subr.mxu0 0.0
        %534 = vmatpush1.msra.mxu0 %v316
        %535 = vmatprep.subr.mxu0 0.0
        %536 = vmatpush1.msra.mxu0 %v317
        %537 = vmatprep.subr.mxu0 0.0
        %538 = vmatpush1.msra.mxu0 %v318
        %539 = vmatprep.subr.mxu0 0.0
        %540 = vmatpush1.msra.mxu0 %v319
        %541 = vmatprep.subr.mxu0 0.0
        %542 = vmatpush1.msra.mxu0 %v320
        %543 = vmatprep.subr.mxu0 0.0
        %544 = vmatpush1.msra.mxu0 %v321
        %545 = vmatprep.subr.mxu0 0.0
        %546 = vmatpush1.msra.mxu0 %v322
        %547 = vmatprep.subr.mxu0 0.0
        %548 = vmatpush1.msra.mxu0 %v323
        %549 = vmatprep.subr.mxu0 0.0
        %550 = vmatpush1.msra.mxu0 %v324
        %551 = vmatprep.subr.mxu0 0.0
        %552 = vmatpush1.msra.mxu0 %v325
        %553 = vmatprep.subr.mxu0 0.0
        %554 = vmatpush1.msra.mxu0 %v326
        %555 = vmatprep.subr.mxu0 0.0
        %556 = vmatpush1.msra.mxu0 %v327
        %557 = vmatprep.subr.mxu0 0.0
        %558 = vmatpush1.msra.mxu0 %v328
        %559 = vmatprep.subr.mxu0 0.0
        %560 = vmatpush1.msra.mxu0 %v329
        %561 = vmatprep.subr.mxu0 0.0
        %562 = vmatpush1.msra.mxu0 %v330
        %563 = vmatprep.subr.mxu0 0.0
        %564 = vmatpush1.msra.mxu0 %v331
        %565 = vmatprep.subr.mxu0 0.0
        %566 = vmatpush1.msra.mxu0 %v332
        %567 = vmatprep.subr.mxu0 0.0
        %568 = vmatpush1.msra.mxu0 %v333
        %569 = vmatprep.subr.mxu0 0.0
        %570 = vmatpush1.msra.mxu0 %v334
        %571 = vmatprep.mubr.f32.mxu0 %v506
        %572 = vmatmul.mubr.f32.gmra.mrb[0].mxu0 %v500
        %v573 = vpop.f32.mrb[0].mxu0
        %v574 = vadd.f32 0.0, %v573
        %v575 = vpop.f32.mrb[0].mxu0
        %576 = vdwg.mxu0
        %v577 = vmul.f32 %v574, 0.00390625
        %v578 = vadd.f32 %v577, 1e-05
        %v579 = vrsqrt.pop %v578
        %v581 = vsel %vm408, %v579, 0
        %583 = vmatprep.subr.mxu0 %v407
        %584 = vmatpush1.msra.mxu0 %v406
        %585 = vmatprep.subr.mxu0 0.0
        %586 = vmatpush1.msra.mxu0 0.0
        %587 = vmatprep.subr.mxu0 0.0
        %588 = vmatpush1.msra.mxu0 0.0
        %589 = vmatprep.subr.mxu0 0.0
        %590 = vmatpush1.msra.mxu0 0.0
        %591 = vmatprep.subr.mxu0 0.0
        %592 = vmatpush1.msra.mxu0 0.0
        %593 = vmatprep.subr.mxu0 0.0
        %594 = vmatpush1.msra.mxu0 0.0
        %595 = vmatprep.subr.mxu0 0.0
        %596 = vmatpush1.msra.mxu0 0.0
        %597 = vmatprep.subr.mxu0 0.0
        %598 = vmatpush1.msra.mxu0 0.0
        %599 = vmatprep.subr.mxu0 0.0
        %600 = vmatpush1.msra.mxu0 0.0
        %601 = vmatprep.subr.mxu0 0.0
        %602 = vmatpush1.msra.mxu0 0.0
        %603 = vmatprep.subr.mxu0 0.0
        %604 = vmatpush1.msra.mxu0 0.0
        %605 = vmatprep.subr.mxu0 0.0
        %606 = vmatpush1.msra.mxu0 0.0
        %607 = vmatprep.subr.mxu0 0.0
        %608 = vmatpush1.msra.mxu0 0.0
        %609 = vmatprep.subr.mxu0 0.0
        %610 = vmatpush1.msra.mxu0 0.0
        %611 = vmatprep.subr.mxu0 0.0
        %612 = vmatpush1.msra.mxu0 0.0
        %613 = vmatprep.subr.mxu0 0.0
        %614 = vmatpush1.msra.mxu0 0.0
        %615 = vmatprep.subr.mxu0 0.0
        %616 = vmatpush1.msra.mxu0 0.0
        %617 = vmatprep.subr.mxu0 0.0
        %618 = vmatpush1.msra.mxu0 0.0
        %619 = vmatprep.subr.mxu0 0.0
        %620 = vmatpush1.msra.mxu0 0.0
        %621 = vmatprep.subr.mxu0 0.0
        %622 = vmatpush1.msra.mxu0 0.0
        %623 = vmatprep.subr.mxu0 0.0
        %624 = vmatpush1.msra.mxu0 0.0
        %625 = vmatprep.subr.mxu0 0.0
        %626 = vmatpush1.msra.mxu0 0.0
        %627 = vmatprep.subr.mxu0 0.0
        %628 = vmatpush1.msra.mxu0 0.0
        %629 = vmatprep.subr.mxu0 0.0
        %630 = vmatpush1.msra.mxu0 0.0
        %631 = vmatprep.subr.mxu0 0.0
        %632 = vmatpush1.msra.mxu0 0.0
        %633 = vmatprep.subr.mxu0 0.0
        %634 = vmatpush1.msra.mxu0 0.0
        %635 = vmatprep.subr.mxu0 0.0
        %636 = vmatpush1.msra.mxu0 0.0
        %637 = vmatprep.subr.mxu0 0.0
        %638 = vmatpush1.msra.mxu0 0.0
        %639 = vmatprep.subr.mxu0 0.0
        %640 = vmatpush1.msra.mxu0 0.0
        %641 = vmatprep.subr.mxu0 0.0
        %642 = vmatpush1.msra.mxu0 0.0
        %643 = vmatprep.subr.mxu0 0.0
        %644 = vmatpush1.msra.mxu0 0.0
        %645 = vmatprep.subr.mxu0 0.0
        %646 = vmatpush1.msra.mxu0 0.0
        %647 = vmatprep.mubr.f32.mxu0 0.0
        %648 = vmatmul.mubr.f32.gmra.mrb[0].mxu0 %v581
        %v649 = vpop.f32.mrb[0].mxu0
        %v650 = vadd.f32 0.0, %v649
        %v651 = vpop.f32.mrb[0].mxu0
        %v652 = vadd.f32 0.0, %v651
        %653 = vdwg.mxu0
        %s654 = smul.u32 %s19, 256
        %s655 = sshra.s32 %s654, 7
        %s656 = sand.u32 %s654, 127
        %s657 = smul.addr %s655, 2
        %s658 = scalar_lea.vmem %s4, %s657
        %v659 = vld [vmem:[%s658] sm:$0xf]
        %v662 = vcombine.low %v650, %v652
        %v664 = vunpack.c.l.s4 1983009808
        %v665 = vunpack.c.0.s8 %v664
        %v666 = vlaneseq
        %v667 = vshrl.u32 %v666, 7
        %v668 = vsub.s32 %v665, %v667
        %v669 = vrot.slane %v662, %v668
        %v671 = vmul.f32 %v659, %v669
        %v673 = vlaneseq
        %v674 = vshrl.u32 %v673, 7
        %v675 = vsub.s32 0, %v674
        %v676 = vrot.slane %v671, %v675
        %v677 = vlaneseq
        %v678 = vshrl.u32 %v677, 7
        %v679 = vsub.s32 2, %v678
        %v680 = vrot.slane %v671, %v679
        %v683 = vlaneseq
        %v684 = vshrl.u32 %v683, 7
        %v685 = vsub.s32 0, %v684
        %v686 = vrot.slane %v676, %v685
        %v687 = vlaneseq
        %v688 = vshrl.u32 %v687, 7
        %v689 = vsub.s32 0, %v688
        %v690 = vrot.slane %v680, %v689
        %v691 = vmul.f32 %v491, %v686
        %v692 = vmul.f32 %v492, %v690
        %v694 = vlaneseq
        %v695 = vshrl.u32 %v694, 7
        %v696 = vsub.s32 1, %v695
        %v697 = vrot.slane %v659, %v696
        %v698 = vlaneseq
        %v699 = vshrl.u32 %v698, 7
        %v700 = vsub.s32 3, %v699
        %v701 = vrot.slane %v659, %v700
        %v704 = vlaneseq
        %v705 = vshrl.u32 %v704, 7
        %v706 = vsub.s32 1, %v705
        %v707 = vrot.slane %v697, %v706
        %v708 = vlaneseq
        %v709 = vshrl.u32 %v708, 7
        %v710 = vsub.s32 1, %v709
        %v711 = vrot.slane %v701, %v710
        %v712 = vadd.f32 %v691, %v707
        %v713 = vadd.f32 %v692, %v711
        %714 = vst [vmem:[%s218] sm:$0xff] %v712
        %715 = vst [vmem:[%s218 + $0x8] sm:$0xff] %v713
        %s716 = sand.u32 %s137, 1
        %s717 = scalar_lea.sflag [#allocation3], %s716
        %s718 = sand.u32 %s137, 1
        %s719 = smul.addr %s718, 16
        %s720 = scalar_lea.vmem [#allocation2], %s719
        // Predicated region
        $region41: #{tpu_custom_call.1} parent=39 // pred_check
          %p721 = pneg %p147
        $region42: #{tpu_custom_call.1} parent=39 // pred_check_branch
          %723 = sbr.rel (%p721) target = $region44
        $region43: #{tpu_custom_call.1} parent=39 // pred_region
          %s724 = smul.u32 2, %s19
          %s726 = ssub.s32 256, 256
          %727 = vsyncadd %s717, %s726
          %s728 = smul.addr %s724, 128
          %s729 = scalar_lea.hbm %s5, %s728
          %s731 = sshll.u32 %s720, 4
          %s732 = int_to_ptr.vmem [resolvable:$true] %s731
          %734 = dma.vmem_to_hbm [thread:$0]  %s732, 256, %s729, %s717
        $region44: #{tpu_custom_call.1} parent=39 // pred_fallthru
          _
      $region40: #{tpu_custom_call.1} parent=5 // pred_fallthru
        _
      %p735 = scmp.le.s32.totalorder 2, %s14
      // Predicated region
      $region45: #{tpu_custom_call.1} parent=5 // pred_check
        %p736 = pneg %p735
      $region46: #{tpu_custom_call.1} parent=5 // pred_check_branch
        %738 = sbr.rel (%p736) target = $region48
      $region47: #{tpu_custom_call.1} parent=5 // pred_region
        %s739 = ssub.s32 %s14, 2
        // Predicated region
        $region49: #{tpu_custom_call.1} parent=47 // pred_check
          %p740 = pneg %p153
        $region50: #{tpu_custom_call.1} parent=47 // pred_check_branch
          %742 = sbr.rel (%p740) target = $region52
        $region51: #{tpu_custom_call.1} parent=47 // pred_region
          %s743 = sand.u32 %s138, 1
          %s744 = scalar_lea.sflag [#allocation3], %s743
          %s745 = sand.u32 %s138, 1
          %s746 = smul.addr %s745, 16
          %s747 = scalar_lea.vmem [#allocation2], %s746
          %748 = dma.done %s744, 256
        $region52: #{tpu_custom_call.1} parent=47 // pred_fallthru
          _
      $region48: #{tpu_custom_call.1} parent=5 // pred_fallthru
        _
    $region6: #{tpu_custom_call.1} parent=1 // loop_footer
      %s18 = sadd.s32 1, %s14
    $region7: #{tpu_custom_call.1} parent=1 // loop_footer_branch
      %13 = sbr.rel target = $region3
    $region8: #{tpu_custom_call.1} parent=1 // loop_exit
      _
    %749 = vsyncpa [#allocation3], 1
    %s750 = scalar_lea.sflag [#allocation3], 1
    %751 = vsyncpa %s750, 1

</llo_original>
